<compile_context>
chip_gen: v6e
topology: v6e:2x2x1
jax: 0.10.0
libtpu: 0.0.40
codegen_flags: <defaults>
</compile_context>

<pallas_src>
import math
import numpy as np
import jax
import jax.numpy as jnp
from jax.experimental import pallas as pl
from jax.experimental.pallas import tpu as pltpu

LRELU_ALPHA = 0.2
ACT_GAIN = math.sqrt(2.0)  # bias_act def_gain for 'lrelu'; forward gain == 1


# ----------------------------- Pallas kernel --------------------------------
def _style_block_kernel(patches_ref, k0_ref, sexp_ref, dcoef_ref, cb_ref,
                        out_ref, acc_ref):
    k = pl.program_id(2)

    @pl.when(k == 0)
    def _():
        acc_ref[...] = jnp.zeros_like(acc_ref)

    # Fold style modulation into the small (TK, OCp) weight tile (cheap compared
    # to touching the (TM, TK) activations), then one bf16 MXU matmul with f32
    # accumulation into VMEM scratch.
    kmod = (k0_ref[...] * sexp_ref[0].astype(jnp.float32)).astype(jnp.bfloat16)
    acc_ref[...] += jnp.dot(patches_ref[0], kmod,
                            preferred_element_type=jnp.float32)

    @pl.when(k == pl.num_programs(2) - 1)
    def _():
        # demodulation + bias + lrelu(0.2) * sqrt(2), all in f32 on the acc tile
        y = acc_ref[...] * dcoef_ref[0] + cb_ref[...]
        y = jnp.where(y >= 0.0, y, LRELU_ALPHA * y) * ACT_GAIN
        out_ref[0] = y.astype(out_ref.dtype)


# ------------------------------- glue ----------------------------------------
def _setup_filter():
    f = np.array([1.0, 3.0, 3.0, 1.0], dtype=np.float32)
    f2 = np.outer(f, f)
    return f2 / f2.sum()


def _round_up(x, m):
    return -(-x // m) * m


def _choose_tiles(M, CK, OC, tm_max=256, tk_max=512):
    """Lane-dense, MXU-friendly tiles that divide the (padded) problem exactly."""
    OCp = _round_up(OC, 128)
    CKp = _round_up(CK, 128)
    n128 = CKp // 128
    d = max(j for j in range(1, tk_max // 128 + 1) if n128 % j == 0)
    TK = 128 * d                       # multiple of 128, divides CKp, <= tk_max
    TM = math.gcd(M, tm_max)           # divides M; power-of-2 spatial sizes -> mult of 8 or == M
    return TM, TK, CKp, OCp


def _block_constants(prm, w_dim, CKp, OCp):
    weight = np.asarray(prm['weight'], dtype=np.float32)        # (OC, IC, 3, 3)
    OC, IC, _, _ = weight.shape
    f2 = _setup_filter()
    # effective kernel: K[oc,ic,p,q] = sum_{a,b} w[oc,ic,2-a,2-b] * f[p-a,q-b]
    K0 = np.zeros((OC, IC, 6, 6), np.float32)
    for a in range(3):
        for b in range(3):
            K0[:, :, a:a + 4, b:b + 4] += (
                weight[:, :, 2 - a, 2 - b][:, :, None, None] * f2[None, None])
    CK = 36 * IC
    K0mat = np.transpose(K0, (2, 3, 1, 0)).reshape(CK, OC)      # row j = t*IC+ic
    K0pad = np.zeros((CKp, OCp), np.float32)
    K0pad[:CK, :OC] = K0mat
    W3sq = np.sum(weight ** 2, axis=(2, 3)).T.astype(np.float32)   # (IC, OC)
    At = (np.asarray(prm['affine_w'], np.float32).T / np.sqrt(w_dim)).astype(np.float32)
    ab = np.asarray(prm['affine_b'], np.float32).reshape(1, IC)
    cb = np.zeros((1, OCp), np.float32)
    cb[0, :OC] = np.asarray(prm['bias'], np.float32)
    return (jnp.asarray(At), jnp.asarray(ab), jnp.asarray(W3sq),
            jnp.asarray(K0pad, dtype=jnp.bfloat16), jnp.asarray(cb))


def style_down_block(x, w, prm, *, tm_max=256, tk_max=512):
    """x: [N, IC, H, W] (NCHW), w: [N, w_dim] -> [N, OC, H/2, W/2]."""
    N, IC, H, W = x.shape
    OC = prm['weight'].shape[0]
    w_dim = w.shape[1]
    Ho, Wo = H // 2, W // 2
    M, CK = Ho * Wo, 36 * IC
    TM, TK, CKp, OCp = _choose_tiles(M, CK, OC, tm_max, tk_max)

    At, ab, W3sq, K0pad, cb = _block_constants(prm, w_dim, CKp, OCp)

    # Per-sample style path (tiny) precomputed outside the kernel.
    styles = jnp.dot(w.astype(jnp.float32), At) + ab                   # (N, IC)
    dcoef = jax.lax.rsqrt(jnp.dot(styles * styles, W3sq) + 1e-8)       # (N, OC)
    dcoef_p = jnp.pad(dcoef, ((0, 0), (0, OCp - OC))).reshape(N, 1, OCp)
    sexp = jnp.tile(styles, (1, 36))                                   # (N, CK), tap-major, IC-minor
    sexp = jnp.pad(sexp, ((0, 0), (0, CKp - CK)))[:, :, None]          # (N, CKp, 1) column layout

    # im2col for the fused (blur o stride-2 3x3) == 6x6 / stride-2 convolution
    # TODO(synk): build the 36 taps in-kernel from NHWC tiles (strided slices /
    # pltpu.roll) instead of materializing the ~9x-larger im2col array in HBM.
    xpad = jnp.pad(x, ((0, 0), (0, 0), (2, 2), (2, 2)))
    cols = []
    for p in range(6):
        for q in range(6):
            cols.append(xpad[:, :, p::2, q::2][:, :, :Ho, :Wo])
    patches = jnp.stack(cols, axis=1)                     # (N, 36, IC, Ho, Wo)
    patches = jnp.transpose(patches, (0, 3, 4, 1, 2))     # (N, Ho, Wo, 36, IC)
    patches = patches.reshape(N, M, CK)
    patches = jnp.pad(patches, ((0, 0), (0, 0), (0, CKp - CK)))
    patches = patches.astype(jnp.bfloat16)

    grid = (N, M // TM, CKp // TK)
    out = pl.pallas_call(
        _style_block_kernel,
        out_shape=jax.ShapeDtypeStruct((N, M, OCp), jnp.float32),
        grid=grid,
        in_specs=[
            pl.BlockSpec((1, TM, TK), lambda n, m, k: (n, m, k)),    # patches (bf16)
            pl.BlockSpec((TK, OCp), lambda n, m, k: (k, 0)),         # fused 6x6 kernel (bf16)
            pl.BlockSpec((1, TK, 1), lambda n, m, k: (n, k, 0)),     # styles column (f32)
            pl.BlockSpec((1, 1, OCp), lambda n, m, k: (n, 0, 0)),    # demod coeff (f32)
            pl.BlockSpec((1, OCp), lambda n, m, k: (0, 0)),          # conv bias (f32)
        ],
        out_specs=pl.BlockSpec((1, TM, OCp), lambda n, m, k: (n, m, 0)),
        scratch_shapes=[pltpu.VMEM((TM, OCp), jnp.float32)],
        compiler_params=pltpu.CompilerParams(
            dimension_semantics=("parallel", "parallel", "arbitrary"),
            vmem_limit_bytes=48 * 1024 * 1024),   # above scoped defaults, below v7x physical
    )(patches, K0pad, sexp, dcoef_p, cb)

    out = out[:, :, :OC].reshape(N, Ho, Wo, OC)
    return jnp.transpose(out, (0, 3, 1, 2))


# ----------------------- encoder: params + forward ---------------------------
def init_encoder_params(key, img_resolution, channel_base, channel_max, w_dim):
    log2 = int(np.log2(img_resolution))
    block_res = [2 ** i for i in range(2, log2 + 1)]
    channels = {r: min(channel_base // r, channel_max) for r in block_res}
    params = {}
    for res in block_res:
        if res > 4:
            oc = channels[res // 2]
            ic = 3 if res == img_resolution else channels[res]
            key, k1, k2 = jax.random.split(key, 3)
            params[res] = {
                'affine_w': jax.random.normal(k1, (ic, w_dim), jnp.float32),
                'affine_b': jnp.ones((ic,), jnp.float32),
                'weight': jax.random.normal(k2, (oc, ic, 3, 3), jnp.float32),
                'bias': jnp.zeros((oc,), jnp.float32),
            }
    return block_res, params


def ibg_style_encoder(ibg, w, block_res, params):
    encs = []
    x = ibg
    for res in block_res[::-1]:
        if res > 4:
            x = style_down_block(x, w, params[res])
            encs.append(x)
    return encs[::-1]


# ----------------------- pure-JAX reference (for checking) -------------------
def _ref_block(x, w, prm):
    N, IC, H, W = x.shape
    weight = prm['weight']
    w_dim = w.shape[1]
    styles = w @ (prm['affine_w'].T / np.sqrt(w_dim)) + prm['affine_b'][None]
    wmod = weight[None] * styles[:, None, :, None, None]
    dcoef = jax.lax.rsqrt(jnp.sum(wmod ** 2, axis=(2, 3, 4)) + 1e-8)
    wdem = wmod * dcoef[:, :, None, None, None]
    f2 = jnp.asarray(_setup_filter())
    xpad = jnp.pad(x, ((0, 0), (0, 0), (2, 2), (2, 2)))
    blur_k = jnp.tile(f2[None, None], (IC, 1, 1, 1))
    blurred = jax.lax.conv_general_dilated(
        xpad, blur_k, (1, 1), 'VALID', feature_group_count=IC,
        dimension_numbers=('NCHW', 'OIHW', 'NCHW'))
    outs = []
    for n in range(N):
        wf = wdem[n][:, :, ::-1, ::-1]   # flip_weight=False => true convolution
        outs.append(jax.lax.conv_general_dilated(
            blurred[n:n + 1], wf, (2, 2), 'VALID',
            dimension_numbers=('NCHW', 'OIHW', 'NCHW')))
    y = jnp.concatenate(outs, 0) + prm['bias'][None, :, None, None]
    return jnp.where(y >= 0.0, y, LRELU_ALPHA * y) * ACT_GAIN


# --------------------------------- main ---------------------------------------
if __name__ == "__main__":
    N, img_res, w_dim = 2, 16, 32
    key = jax.random.PRNGKey(0)
    kp, k1, k2 = jax.random.split(key, 3)
    block_res, params = init_encoder_params(
        kp, img_res, channel_base=256, channel_max=32, w_dim=w_dim)

    ibg = jax.random.normal(k1, (N, 3, img_res, img_res), jnp.float32)
    w = jax.random.normal(k2, (N, w_dim), jnp.float32)

    encs = ibg_style_encoder(ibg, w, block_res, params)
    encs = jax.block_until_ready(encs)

    # cross-check against a literal blur -> strided modulated-conv reference
    # (tolerance loosened vs rev 1 because patches/K0 are now bf16 MXU operands)
    x_ref = ibg
    ref_encs = []
    for res in block_res[::-1]:
        if res > 4:
            x_ref = _ref_block(x_ref, w, params[res])
            ref_encs.append(x_ref)
    ref_encs = ref_encs[::-1]
    for a, b in zip(encs, ref_encs):
        assert a.shape == b.shape and a.dtype == b.dtype
        np.testing.assert_allclose(np.asarray(a), np.asarray(b), rtol=3e-2, atol=3e-2)

    print("KERNEL_OK")
</pallas_src>

<mosaic_0001>
module attributes {stable_mosaic.version = 11 : i64} {
  func.func @_style_block_kernel(%arg0: i32, %arg1: i32, %arg2: i32, %arg3: memref<1x64x128xbf16, #tpu.memory_space<vmem>>, %arg4: memref<128x128xbf16, #tpu.memory_space<vmem>>, %arg5: memref<1x128x1xf32, #tpu.memory_space<vmem>>, %arg6: memref<1x1x128xf32, #tpu.memory_space<vmem>>, %arg7: memref<1x128xf32, #tpu.memory_space<vmem>>, %arg8: memref<1x64x128xf32, #tpu.memory_space<vmem>>, %arg9: memref<64x128xf32, #tpu.memory_space<vmem>>) attributes {dimension_semantics = [#tpu.dimension_semantics<parallel>, #tpu.dimension_semantics<parallel>, #tpu.dimension_semantics<arbitrary>], iteration_bounds = array<i64: 2, 1, 1>, scalar_prefetch = 0 : i64, scratch_operands = 1 : i64, tpu.core_type = #tpu.core_type<tc>, window_params = [{transform_indices = @transform_0, window_bounds = array<i64: 1, 64, 128>}, {transform_indices = @transform_1, window_bounds = array<i64: 128, 128>}, {transform_indices = @transform_2, window_bounds = array<i64: 1, 128, 1>}, {transform_indices = @transform_3, window_bounds = array<i64: 1, 1, 128>}, {pipeline_mode = #tpu.pipeline_mode<synchronous>, transform_indices = @transform_4, window_bounds = array<i64: 1, 128>}, {transform_indices = @transform_5, window_bounds = array<i64: 1, 64, 128>}]} {
    %c0_i32 = arith.constant 0 : i32
    %0 = arith.cmpi eq, %arg2, %c0_i32 : i32
    %1 = arith.extui %0 : i1 to i32
    %c0_i32_0 = arith.constant 0 : i32
    %2 = arith.cmpi ne, %1, %c0_i32_0 : i32
    scf.if %2 {
      %cst_14 = arith.constant 0.000000e+00 : f32
      %19 = vector.broadcast %cst_14 : f32 to vector<64x128xf32>
      %c0_15 = arith.constant 0 : index
      %c0_16 = arith.constant 0 : index
      %20 = vector.load %arg9[%c0_15, %c0_16] : memref<64x128xf32, #tpu.memory_space<vmem>>, vector<64x128xf32>
      tpu.vector_store %arg9[%c0_15, %c0_16], %19 {strides = array<i32>} : memref<64x128xf32, #tpu.memory_space<vmem>>, vector<64x128xf32>,
    } else {
    }
    %c0 = arith.constant 0 : index
    %c0_1 = arith.constant 0 : index
    %3 = vector.load %arg4[%c0, %c0_1] : memref<128x128xbf16, #tpu.memory_space<vmem>>, vector<128x128xbf16>
    %c0_2 = arith.constant 0 : index
    %c0_3 = arith.constant 0 : index
    %c0_4 = arith.constant 0 : index
    %4 = vector.load %arg5[%c0_2, %c0_3, %c0_4] : memref<1x128x1xf32, #tpu.memory_space<vmem>>, vector<1x128x1xf32>
    %5 = vector.shape_cast %4 : vector<1x128x1xf32> to vector<128x1xf32>
    %6 = arith.extf %3 : vector<128x128xbf16> to vector<128x128xf32>
    %7 = vector.broadcast %5 : vector<128x1xf32> to vector<128x128xf32>
    %8 = arith.mulf %6, %7 : vector<128x128xf32>
    %9 = arith.truncf %8 : vector<128x128xf32> to vector<128x128xbf16>
    %c0_5 = arith.constant 0 : index
    %c0_6 = arith.constant 0 : index
    %10 = vector.load %arg9[%c0_5, %c0_6] : memref<64x128xf32, #tpu.memory_space<vmem>>, vector<64x128xf32>
    %c0_7 = arith.constant 0 : index
    %c0_8 = arith.constant 0 : index
    %c0_9 = arith.constant 0 : index
    %11 = vector.load %arg3[%c0_7, %c0_8, %c0_9] : memref<1x64x128xbf16, #tpu.memory_space<vmem>>, vector<1x64x128xbf16>
    %12 = vector.shape_cast %11 : vector<1x64x128xbf16> to vector<64x128xbf16>
    %cst = arith.constant dense<0.000000e+00> : vector<64x128xf32>
    %13 = tpu.matmul %12, %9, %cst {dimension_numbers = #tpu.dot_dimension_numbers<[1], [0], [0], [1], [0, 0, 1, 1], [], []>} : vector<64x128xbf16>, vector<128x128xbf16>, vector<64x128xf32> -> vector<64x128xf32>
    %14 = arith.addf %10, %13 : vector<64x128xf32>
    %c0_10 = arith.constant 0 : index
    %c0_11 = arith.constant 0 : index
    %15 = vector.load %arg9[%c0_10, %c0_11] : memref<64x128xf32, #tpu.memory_space<vmem>>, vector<64x128xf32>
    tpu.vector_store %arg9[%c0_10, %c0_11], %14 {strides = array<i32>} : memref<64x128xf32, #tpu.memory_space<vmem>>, vector<64x128xf32>,
    %c0_i32_12 = arith.constant 0 : i32
    %16 = arith.cmpi eq, %arg2, %c0_i32_12 : i32
    %17 = arith.extui %16 : i1 to i32
    %c0_i32_13 = arith.constant 0 : i32
    %18 = arith.cmpi ne, %17, %c0_i32_13 : i32
    scf.if %18 {
      %c0_14 = arith.constant 0 : index
      %c0_15 = arith.constant 0 : index
      %19 = vector.load %arg9[%c0_14, %c0_15] : memref<64x128xf32, #tpu.memory_space<vmem>>, vector<64x128xf32>
      %c0_16 = arith.constant 0 : index
      %c0_17 = arith.constant 0 : index
      %c0_18 = arith.constant 0 : index
      %20 = vector.load %arg6[%c0_16, %c0_17, %c0_18] : memref<1x1x128xf32, #tpu.memory_space<vmem>>, vector<1x1x128xf32>
      %21 = vector.shape_cast %20 : vector<1x1x128xf32> to vector<1x128xf32>
      %22 = vector.broadcast %21 : vector<1x128xf32> to vector<64x128xf32>
      %23 = arith.mulf %19, %22 : vector<64x128xf32>
      %c0_19 = arith.constant 0 : index
      %c0_20 = arith.constant 0 : index
      %24 = vector.load %arg7[%c0_19, %c0_20] : memref<1x128xf32, #tpu.memory_space<vmem>>, vector<1x128xf32>
      %25 = vector.broadcast %24 : vector<1x128xf32> to vector<64x128xf32>
      %26 = arith.addf %23, %25 : vector<64x128xf32>
      %cst_21 = arith.constant 0.000000e+00 : f32
      %27 = vector.broadcast %cst_21 : f32 to vector<64x128xf32>
      %28 = arith.cmpf oge, %26, %27 : vector<64x128xf32>
      %cst_22 = arith.constant 2.000000e-01 : f32
      %29 = vector.broadcast %cst_22 : f32 to vector<64x128xf32>
      %30 = arith.mulf %29, %26 : vector<64x128xf32>
      %31 = arith.select %28, %26, %30 : vector<64x128xi1>, vector<64x128xf32>
      %cst_23 = arith.constant 1.41421354 : f32
      %32 = vector.broadcast %cst_23 : f32 to vector<64x128xf32>
      %33 = arith.mulf %31, %32 : vector<64x128xf32>
      %c0_24 = arith.constant 0 : index
      %c0_25 = arith.constant 0 : index
      %c0_26 = arith.constant 0 : index
      %34 = vector.load %arg8[%c0_24, %c0_25, %c0_26] : memref<1x64x128xf32, #tpu.memory_space<vmem>>, vector<1x64x128xf32>
      %35 = vector.shape_cast %34 : vector<1x64x128xf32> to vector<64x128xf32>
      %36 = vector.shape_cast %33 : vector<64x128xf32> to vector<1x64x128xf32>
      tpu.vector_store %arg8[%c0_24, %c0_25, %c0_26], %36 {strides = array<i32>} : memref<1x64x128xf32, #tpu.memory_space<vmem>>, vector<1x64x128xf32>,
    } else {
    }
    return
  }
  func.func @transform_0(%arg0: i32, %arg1: i32, %arg2: i32) -> (i32, i32, i32) {
    %c0_i32 = arith.constant 0 : i32
    return %arg0, %arg1, %arg2 : i32, i32, i32
  }
  func.func @transform_1(%arg0: i32, %arg1: i32, %arg2: i32) -> (i32, i32) {
    %c0_i32 = arith.constant 0 : i32
    %c0_i32_0 = arith.constant 0 : i32
    return %arg2, %c0_i32 : i32, i32
  }
  func.func @transform_2(%arg0: i32, %arg1: i32, %arg2: i32) -> (i32, i32, i32) {
    %c0_i32 = arith.constant 0 : i32
    %c0_i32_0 = arith.constant 0 : i32
    return %arg0, %arg2, %c0_i32 : i32, i32, i32
  }
  func.func @transform_3(%arg0: i32, %arg1: i32, %arg2: i32) -> (i32, i32, i32) {
    %c0_i32 = arith.constant 0 : i32
    %c0_i32_0 = arith.constant 0 : i32
    %c0_i32_1 = arith.constant 0 : i32
    return %arg0, %c0_i32, %c0_i32_0 : i32, i32, i32
  }
  func.func @transform_4(%arg0: i32, %arg1: i32, %arg2: i32) -> (i32, i32) {
    %c0_i32 = arith.constant 0 : i32
    %c0_i32_0 = arith.constant 0 : i32
    %c0_i32_1 = arith.constant 0 : i32
    return %c0_i32, %c0_i32_0 : i32, i32
  }
  func.func @transform_5(%arg0: i32, %arg1: i32, %arg2: i32) -> (i32, i32, i32) {
    %c0_i32 = arith.constant 0 : i32
    %c0_i32_0 = arith.constant 0 : i32
    return %arg0, %arg1, %c0_i32 : i32, i32, i32
  }
}

</mosaic_0001>

<llo_original>
// kernel: tpu_custom_call.1
$region0: #{tpu_custom_call.1}
  #allocation0 [shape = 'u32[]', space=smem, size = 0x4, offset = 0x4, fixed_abs, tag = 'smem constant byte address 0x4 - core index']
  #allocation1 [shape = 'u32[144,128]{1,0:T(1,128)}', space=vmem, size = 0x12000, scoped, tag = 'internal scratch']
  #allocation2 [shape = 'f32[64,128]{1,0:T(8,128)}', space=vmem, size = 0x8000, scoped, tag = 'scratch operand']
  %s0 = inlined_call_operand.vmem [shape: bf16[2,64,128], index: 0, kind: input, shape index: {}]
  %s1 = inlined_call_operand.vmem [shape: bf16[128,128], index: 1, kind: input, shape index: {}]
  %s2 = inlined_call_operand.vmem [shape: f32[2,128,1], index: 2, kind: input, shape index: {}]
  %s3 = inlined_call_operand.vmem [shape: f32[2,1,128], index: 3, kind: input, shape index: {}]
  %s4 = inlined_call_operand.vmem [shape: f32[1,128], index: 4, kind: input, shape index: {}]
  %s5 = inlined_call_operand.hbm [shape: f32[2,64,128], index: 5, kind: output, shape index: {}]
  %s6 = sld [smem:[#allocation0]]
  $region61: #{tpu_custom_call.1} parent=0
    _
  %s8 = ssub.s32 1, %s6
  %s9 = scalar_select 0, %s8, %s6
  $region1: #{tpu_custom_call.1} parent=0
    #allocation3 [shape = 'u8[65536]{0}', space=vmem, size = 0x10000, scoped, tag = 'output window, operand 0']
    #allocation4 [shape = 's32[2]{0}', space=sflag, size = 0x8, scoped, tag = 'scoped memory for tpu_custom_call.1']
    %10 = vsyncpa [#allocation4], 0
    %s11 = scalar_lea.sflag [#allocation4], 1
    %12 = vsyncpa %s11, 0
    loop: start=0, step=1, limit=4
    $region2: #{tpu_custom_call.1} parent=1 // loop_pre_header
      _
    $region3: #{tpu_custom_call.1} parent=1 // loop_header
      %s14 = sphi 0, %s18
      %p15 = scmp.ge.s32.totalorder %s14, 4
      %s21 = sphi 0, %s40
      %s22 = sphi 0, %s36
      %s23 = sphi 0, %s32
      %s24 = sphi 0, %s21
      %s25 = sphi 0, %s22
      %s26 = sphi 0, %s23
      %s27 = sphi 0, %s24
      %s28 = sphi 0, %s25
      %s29 = sphi 0, %s26
      %s47 = sphi 0, %s49
      %s50 = sphi 0, %s47
      %s51 = sphi 0, %s50
      %s67 = sphi 0, %s51
      %s73 = sphi 0, %s75
      %s76 = sphi 0, %s73
      %s77 = sphi 0, %s76
      %s93 = sphi 0, %s77
      %s101 = sphi 0, %s103
      %s104 = sphi 0, %s101
      %s105 = sphi 0, %s104
      %s121 = sphi 0, %s105
      %s127 = sphi 0, %s129
      %s130 = sphi 0, %s127
      %s131 = sphi 0, %s130
      %s147 = sphi 0, %s131
      %s151 = sphi 0, %s151
      %s153 = sphi 0, %s151
      %s154 = sphi 0, %s153
      %s168 = sphi 0, %s154
      %s176 = sphi 0, %s178
      %s179 = sphi 0, %s176
      %s180 = sphi 0, %s179
      %s196 = sphi 0, %s180
    $region4: #{tpu_custom_call.1} parent=1 // loop_header_branch
      %17 = sbr.rel (%p15) target = $region8
    $region5: #{tpu_custom_call.1} parent=1 // loop_body
      %s19 = ssub.s32 %s14, 1
      %s20 = ssub.s32 %s14, 2
      %s30 = sadd.s32 1, %s23
      %p31 = scmp.ge.s32.totalorder %s30, 1
      %s32 = scalar_select %p31, 0, %s30
      %s33 = sadd.s32 1, %s22
      %s34 = scalar_select %p31, %s33, %s22
      %p35 = scmp.ge.s32.totalorder %s34, 1
      %s36 = scalar_select %p35, 0, %s34
      %s37 = sadd.s32 1, %s21
      %s38 = scalar_select %p35, %s37, %s21
      %p39 = scmp.ge.s32.totalorder %s38, 2
      %s40 = scalar_select %p39, 0, %s38
      %s41 = ssub.s32 %s21, %s40
      %s42 = ssub.s32 %s22, %s36
      %s43 = sor.u32 %s41, %s42
      %s44 = ssub.s32 %s23, %s32
      %s45 = sor.u32 %s43, %s44
      %p46 = scmp.eq.s32.totalorder %s45, 0
      %s48 = sadd.s32 %s47, 1
      %s49 = scalar_select %p46, %s47, %s48
      %p52 = pneg %p46
      %p53 = scmp.eq.s32.totalorder %s14, 1
      %p54 = por %p52, %p53
      %p55 = scmp.ne.s32.totalorder %s47, %s50
      %p56 = scmp.eq.s32.totalorder %s14, 0
      %p57 = por %p55, %p56
      %p58 = scmp.ne.s32.totalorder %s47, %s50
      %p59 = scmp.eq.s32.totalorder %s19, 1
      %p60 = por %p58, %p59
      %p61 = scmp.ne.s32.totalorder %s50, %s51
      %p62 = scmp.eq.s32.totalorder %s19, 0
      %p63 = por %p61, %p62
      %p64 = scmp.ne.s32.totalorder %s50, %s51
      %p65 = scmp.eq.s32.totalorder %s20, 1
      %p66 = por %p64, %p65
      %p68 = scmp.ne.s32.totalorder %s51, %s67
      %p69 = scmp.eq.s32.totalorder %s20, 0
      %p70 = por %p68, %p69
      %s71 = ssub.s32 %s23, %s32
      %p72 = scmp.eq.s32.totalorder %s71, 0
      %s74 = sadd.s32 %s73, 1
      %s75 = scalar_select %p72, %s73, %s74
      %p78 = pneg %p72
      %p79 = scmp.eq.s32.totalorder %s14, 1
      %p80 = por %p78, %p79
      %p81 = scmp.ne.s32.totalorder %s73, %s76
      %p82 = scmp.eq.s32.totalorder %s14, 0
      %p83 = por %p81, %p82
      %p84 = scmp.ne.s32.totalorder %s73, %s76
      %p85 = scmp.eq.s32.totalorder %s19, 1
      %p86 = por %p84, %p85
      %p87 = scmp.ne.s32.totalorder %s76, %s77
      %p88 = scmp.eq.s32.totalorder %s19, 0
      %p89 = por %p87, %p88
      %p90 = scmp.ne.s32.totalorder %s76, %s77
      %p91 = scmp.eq.s32.totalorder %s20, 1
      %p92 = por %p90, %p91
      %p94 = scmp.ne.s32.totalorder %s77, %s93
      %p95 = scmp.eq.s32.totalorder %s20, 0
      %p96 = por %p94, %p95
      %s97 = ssub.s32 %s21, %s40
      %s98 = ssub.s32 %s23, %s32
      %s99 = sor.u32 %s97, %s98
      %p100 = scmp.eq.s32.totalorder %s99, 0
      %s102 = sadd.s32 %s101, 1
      %s103 = scalar_select %p100, %s101, %s102
      %p106 = pneg %p100
      %p107 = scmp.eq.s32.totalorder %s14, 1
      %p108 = por %p106, %p107
      %p109 = scmp.ne.s32.totalorder %s101, %s104
      %p110 = scmp.eq.s32.totalorder %s14, 0
      %p111 = por %p109, %p110
      %p112 = scmp.ne.s32.totalorder %s101, %s104
      %p113 = scmp.eq.s32.totalorder %s19, 1
      %p114 = por %p112, %p113
      %p115 = scmp.ne.s32.totalorder %s104, %s105
      %p116 = scmp.eq.s32.totalorder %s19, 0
      %p117 = por %p115, %p116
      %p118 = scmp.ne.s32.totalorder %s104, %s105
      %p119 = scmp.eq.s32.totalorder %s20, 1
      %p120 = por %p118, %p119
      %p122 = scmp.ne.s32.totalorder %s105, %s121
      %p123 = scmp.eq.s32.totalorder %s20, 0
      %p124 = por %p122, %p123
      %s125 = ssub.s32 %s21, %s40
      %p126 = scmp.eq.s32.totalorder %s125, 0
      %s128 = sadd.s32 %s127, 1
      %s129 = scalar_select %p126, %s127, %s128
      %p132 = pneg %p126
      %p133 = scmp.eq.s32.totalorder %s14, 1
      %p134 = por %p132, %p133
      %p135 = scmp.ne.s32.totalorder %s127, %s130
      %p136 = scmp.eq.s32.totalorder %s14, 0
      %p137 = por %p135, %p136
      %p138 = scmp.ne.s32.totalorder %s127, %s130
      %p139 = scmp.eq.s32.totalorder %s19, 1
      %p140 = por %p138, %p139
      %p141 = scmp.ne.s32.totalorder %s130, %s131
      %p142 = scmp.eq.s32.totalorder %s19, 0
      %p143 = por %p141, %p142
      %p144 = scmp.ne.s32.totalorder %s130, %s131
      %p145 = scmp.eq.s32.totalorder %s20, 1
      %p146 = por %p144, %p145
      %p148 = scmp.ne.s32.totalorder %s131, %s147
      %p149 = scmp.eq.s32.totalorder %s20, 0
      %p150 = por %p148, %p149
      %s152 = sadd.s32 %s151, 1
      %p155 = scmp.eq.s32.totalorder %s14, 1
      %p156 = scmp.ne.s32.totalorder %s151, %s153
      %p157 = scmp.eq.s32.totalorder %s14, 0
      %p158 = por %p156, %p157
      %p159 = scmp.ne.s32.totalorder %s151, %s153
      %p160 = scmp.eq.s32.totalorder %s19, 1
      %p161 = por %p159, %p160
      %p162 = scmp.ne.s32.totalorder %s153, %s154
      %p163 = scmp.eq.s32.totalorder %s19, 0
      %p164 = por %p162, %p163
      %p165 = scmp.ne.s32.totalorder %s153, %s154
      %p166 = scmp.eq.s32.totalorder %s20, 1
      %p167 = por %p165, %p166
      %p169 = scmp.ne.s32.totalorder %s154, %s168
      %p170 = scmp.eq.s32.totalorder %s20, 0
      %p171 = por %p169, %p170
      %s172 = ssub.s32 %s21, %s40
      %s173 = ssub.s32 %s22, %s36
      %s174 = sor.u32 %s172, %s173
      %p175 = scmp.eq.s32.totalorder %s174, 0
      %s177 = sadd.s32 %s176, 1
      %s178 = scalar_select %p175, %s176, %s177
      %p181 = pneg %p175
      %p182 = scmp.eq.s32.totalorder %s14, 1
      %p183 = por %p181, %p182
      %p184 = scmp.ne.s32.totalorder %s176, %s179
      %p185 = scmp.eq.s32.totalorder %s14, 0
      %p186 = por %p184, %p185
      %p187 = scmp.ne.s32.totalorder %s176, %s179
      %p188 = scmp.eq.s32.totalorder %s19, 1
      %p189 = por %p187, %p188
      %p190 = scmp.ne.s32.totalorder %s179, %s180
      %p191 = scmp.eq.s32.totalorder %s19, 0
      %p192 = por %p190, %p191
      %p193 = scmp.ne.s32.totalorder %s179, %s180
      %p194 = scmp.eq.s32.totalorder %s20, 1
      %p195 = por %p193, %p194
      %p197 = scmp.ne.s32.totalorder %s180, %s196
      %p198 = scmp.eq.s32.totalorder %s20, 0
      %p199 = por %p197, %p198
      %p200 = scmp.le.s32.totalorder 1, %s14
      %p201 = scmp.lt.s32.totalorder %s14, 3
      %p202 = pnand %p200, %p201
      %p203 = pneg %p202
      // Predicated region
      $region9: #{tpu_custom_call.1} parent=5 // pred_check
        _
      $region10: #{tpu_custom_call.1} parent=5 // pred_check_branch
        %205 = sbr.rel (%p202) target = $region12
      $region11: #{tpu_custom_call.1} parent=5 // pred_region
        %s206 = ssub.s32 %s14, 1
        // Predicated region
        $region13: #{tpu_custom_call.1} parent=11 // pred_check
          %p207 = pneg %p89
        $region14: #{tpu_custom_call.1} parent=11 // pred_check_branch
          %209 = sbr.rel (%p207) target = $region16
        $region15: #{tpu_custom_call.1} parent=11 // pred_region
          %s210 = smul.u32 16, %s26
          %p211 = scmp.lt.s32.totalorder %s210, 15
          %s212 = scalar_select %p211, %s210, 15
          %s213 = smul.addr %s212, 4
          %s214 = scalar_lea.vmem %s1, %s213
          %s215 = smul.u32 16, %s26
        $region16: #{tpu_custom_call.1} parent=11 // pred_fallthru
          _
        // Predicated region
        $region17: #{tpu_custom_call.1} parent=11 // pred_check
          %p216 = pneg %p164
        $region18: #{tpu_custom_call.1} parent=11 // pred_check_branch
          %218 = sbr.rel (%p216) target = $region20
        $region19: #{tpu_custom_call.1} parent=11 // pred_region
          _
        $region20: #{tpu_custom_call.1} parent=11 // pred_fallthru
          _
      $region12: #{tpu_custom_call.1} parent=5 // pred_fallthru
        _
      %p219 = scmp.lt.s32.totalorder %s14, 2
      // Predicated region
      $region21: #{tpu_custom_call.1} parent=5 // pred_check
        %p220 = pneg %p219
      $region22: #{tpu_custom_call.1} parent=5 // pred_check_branch
        %222 = sbr.rel (%p220) target = $region24
      $region23: #{tpu_custom_call.1} parent=5 // pred_region
        // Predicated region
        $region25: #{tpu_custom_call.1} parent=23 // pred_check
          %p223 = pneg %p57
        $region26: #{tpu_custom_call.1} parent=23 // pred_check_branch
          %225 = sbr.rel (%p223) target = $region28
        $region27: #{tpu_custom_call.1} parent=23 // pred_region
          %s226 = smul.u32 8, %s22
          %p227 = scmp.lt.s32.totalorder %s21, 1
          %s228 = scalar_select %p227, %s21, 1
          %p229 = scmp.lt.s32.totalorder %s226, 7
          %s230 = scalar_select %p229, %s226, 7
          %p231 = scmp.lt.s32.totalorder %s23, 0
          %s232 = scalar_select %p231, %s23, 0
          %s233 = sadd.s32 %s232, %s230
          %s234 = smul.addr %s228, 8
          %s235 = sadd.s32 %s233, %s234
          %s236 = smul.addr %s235, 4
          %s237 = scalar_lea.vmem %s0, %s236
          %s238 = smul.u32 8, %s22
        $region28: #{tpu_custom_call.1} parent=23 // pred_fallthru
          _
        // Predicated region
        $region29: #{tpu_custom_call.1} parent=23 // pred_check
          %p239 = pneg %p111
        $region30: #{tpu_custom_call.1} parent=23 // pred_check_branch
          %241 = sbr.rel (%p239) target = $region32
        $region31: #{tpu_custom_call.1} parent=23 // pred_region
          %s242 = smul.u32 16, %s23
          %p243 = scmp.lt.s32.totalorder %s21, 1
          %s244 = scalar_select %p243, %s21, 1
          %p245 = scmp.lt.s32.totalorder %s242, 15
          %s246 = scalar_select %p245, %s242, 15
          %s247 = smul.addr %s244, 16
          %s248 = sadd.s32 %s246, %s247
          %s249 = smul.addr %s248, 8
          %s250 = scalar_lea.vmem %s2, %s249
          %s251 = smul.u32 16, %s23
        $region32: #{tpu_custom_call.1} parent=23 // pred_fallthru
          _
        // Predicated region
        $region33: #{tpu_custom_call.1} parent=23 // pred_check
          %p252 = pneg %p137
        $region34: #{tpu_custom_call.1} parent=23 // pred_check_branch
          %254 = sbr.rel (%p252) target = $region36
        $region35: #{tpu_custom_call.1} parent=23 // pred_region
          %p255 = scmp.lt.s32.totalorder %s21, 1
          %s256 = scalar_select %p255, %s21, 1
          %s257 = scalar_lea.vmem %s3, %s256
        $region36: #{tpu_custom_call.1} parent=23 // pred_fallthru
          _
      $region24: #{tpu_custom_call.1} parent=5 // pred_fallthru
        _
      %p258 = scmp.le.s32.totalorder 1, %s14
      %p259 = scmp.lt.s32.totalorder %s14, 3
      %p260 = pnand %p258, %p259
      %p261 = pneg %p260
      // Predicated region
      $region37: #{tpu_custom_call.1} parent=5 // pred_check
        _
      $region38: #{tpu_custom_call.1} parent=5 // pred_check_branch
        %263 = sbr.rel (%p260) target = $region40
      $region39: #{tpu_custom_call.1} parent=5 // pred_region
        %s264 = ssub.s32 %s14, 1
        %s265 = smul.u32 8, %s25
        %p266 = scmp.lt.s32.totalorder %s24, 1
        %s267 = scalar_select %p266, %s24, 1
        %p268 = scmp.lt.s32.totalorder %s265, 7
        %s269 = scalar_select %p268, %s265, 7
        %p270 = scmp.lt.s32.totalorder %s26, 0
        %s271 = scalar_select %p270, %s26, 0
        %s272 = sadd.s32 %s271, %s269
        %s273 = smul.addr %s267, 8
        %s274 = sadd.s32 %s272, %s273
        %s275 = smul.addr %s274, 4
        %s276 = scalar_lea.vmem %s0, %s275
        %p277 = pneg %p63
        %p278 = pneg %p60
        %s279 = smul.u32 16, %s26
        %p280 = scmp.lt.s32.totalorder %s279, 15
        %s281 = scalar_select %p280, %s279, 15
        %s282 = smul.addr %s281, 4
        %s283 = scalar_lea.vmem %s1, %s282
        %p284 = pneg %p89
        %p285 = pneg %p86
        %s286 = smul.u32 16, %s26
        %p287 = scmp.lt.s32.totalorder %s24, 1
        %s288 = scalar_select %p287, %s24, 1
        %p289 = scmp.lt.s32.totalorder %s286, 15
        %s290 = scalar_select %p289, %s286, 15
        %s291 = smul.addr %s288, 16
        %s292 = sadd.s32 %s290, %s291
        %s293 = smul.addr %s292, 8
        %s294 = scalar_lea.vmem %s2, %s293
        %p295 = pneg %p117
        %p296 = pneg %p114
        %p297 = scmp.lt.s32.totalorder %s24, 1
        %s298 = scalar_select %p297, %s24, 1
        %s299 = scalar_lea.vmem %s3, %s298
        %p300 = pneg %p143
        %p301 = pneg %p140
        %p302 = pneg %p164
        %p303 = pneg %p161
        %p304 = pneg %p192
        %p305 = pneg %p189
        %s306 = sand.u32 %s179, 1
        %s307 = scalar_lea.sflag [#allocation4], %s306
        %s308 = sand.u32 %s179, 1
        %s309 = smul.addr %s308, 64
        %s310 = scalar_lea.vmem [#allocation3], %s309
        %s311 = smul.u32 8, %s25
        %p312 = scmp.lt.s32.totalorder %s24, 1
        %s313 = scalar_select %p312, %s24, 1
        %p314 = scmp.lt.s32.totalorder %s311, 7
        %s315 = scalar_select %p314, %s311, 7
        %p316 = scmp.lt.s32.totalorder %s26, 0
        %s317 = scalar_select %p316, %s26, 0
        %s318 = sadd.s32 %s317, %s315
        %s319 = smul.addr %s313, 8
        %s320 = sadd.s32 %s318, %s319
        %s321 = smul.addr %s320, 4
        %s322 = scalar_lea.vmem %s0, %s321
        %s323 = smul.u32 8, %s25
        %s324 = smul.u32 16, %s26
        %p325 = scmp.lt.s32.totalorder %s324, 15
        %s326 = scalar_select %p325, %s324, 15
        %s327 = smul.addr %s326, 4
        %s328 = scalar_lea.vmem %s1, %s327
        %s329 = smul.u32 16, %s26
        %s330 = smul.u32 16, %s26
        %p331 = scmp.lt.s32.totalorder %s24, 1
        %s332 = scalar_select %p331, %s24, 1
        %p333 = scmp.lt.s32.totalorder %s330, 15
        %s334 = scalar_select %p333, %s330, 15
        %s335 = smul.addr %s332, 16
        %s336 = sadd.s32 %s334, %s335
        %s337 = smul.addr %s336, 8
        %s338 = scalar_lea.vmem %s2, %s337
        %s339 = smul.u32 16, %s26
        %p340 = scmp.lt.s32.totalorder %s24, 1
        %s341 = scalar_select %p340, %s24, 1
        %s342 = scalar_lea.vmem %s3, %s341
        %s343 = smul.u32 8, %s25
        %p345 = scmp.eq.s32.totalorder %s26, 0
        // Predicated region
        $region41: #{tpu_custom_call.1} parent=39 // pred_check
          %p346 = pneg %p345
        $region42: #{tpu_custom_call.1} parent=39 // pred_check_branch
          %348 = sbr.rel (%p346) target = $region44
        $region43: #{tpu_custom_call.1} parent=39 // pred_region
          %349 = vst [vmem:[#allocation2] sm:$0xff] 0.0
          %350 = vst [vmem:[#allocation2 + $0x8] sm:$0xff] 0.0
          %351 = vst [vmem:[#allocation2 + $0x10] sm:$0xff] 0.0
          %352 = vst [vmem:[#allocation2 + $0x18] sm:$0xff] 0.0
          %353 = vst [vmem:[#allocation2 + $0x20] sm:$0xff] 0.0
          %354 = vst [vmem:[#allocation2 + $0x28] sm:$0xff] 0.0
          %355 = vst [vmem:[#allocation2 + $0x30] sm:$0xff] 0.0
          %356 = vst [vmem:[#allocation2 + $0x38] sm:$0xff] 0.0
        $region44: #{tpu_custom_call.1} parent=39 // pred_fallthru
          _
        %v357 = vld [vmem:[%s328] sm:$0xf]
        %v358 = vld [vmem:[%s328 + $0x4] sm:$0xf]
        %v359 = vld [vmem:[%s328 + $0x8] sm:$0xf]
        %v360 = vld [vmem:[%s328 + $0xc] sm:$0xf]
        %v361 = vld [vmem:[%s328 + $0x10] sm:$0xf]
        %v362 = vld [vmem:[%s328 + $0x14] sm:$0xf]
        %v363 = vld [vmem:[%s328 + $0x18] sm:$0xf]
        %v364 = vld [vmem:[%s328 + $0x1c] sm:$0xf]
        %v365 = vld [vmem:[%s328 + $0x20] sm:$0xf]
        %v366 = vld [vmem:[%s328 + $0x24] sm:$0xf]
        %v367 = vld [vmem:[%s328 + $0x28] sm:$0xf]
        %v368 = vld [vmem:[%s328 + $0x2c] sm:$0xf]
        %v369 = vld [vmem:[%s328 + $0x30] sm:$0xf]
        %v370 = vld [vmem:[%s328 + $0x34] sm:$0xf]
        %v371 = vld [vmem:[%s328 + $0x38] sm:$0xf]
        %v372 = vld [vmem:[%s328 + $0x3c] sm:$0xf]
        %v373 = vld [vmem:[%s338] sm:$0xff]
        %v374 = vld [vmem:[%s338 + $0x8] sm:$0xff]
        %v375 = vld [vmem:[%s338 + $0x10] sm:$0xff]
        %v376 = vld [vmem:[%s338 + $0x18] sm:$0xff]
        %v377 = vld [vmem:[%s338 + $0x20] sm:$0xff]
        %v378 = vld [vmem:[%s338 + $0x28] sm:$0xff]
        %v379 = vld [vmem:[%s338 + $0x30] sm:$0xff]
        %v380 = vld [vmem:[%s338 + $0x38] sm:$0xff]
        %v381 = vld [vmem:[%s338 + $0x40] sm:$0xff]
        %v382 = vld [vmem:[%s338 + $0x48] sm:$0xff]
        %v383 = vld [vmem:[%s338 + $0x50] sm:$0xff]
        %v384 = vld [vmem:[%s338 + $0x58] sm:$0xff]
        %v385 = vld [vmem:[%s338 + $0x60] sm:$0xff]
        %v386 = vld [vmem:[%s338 + $0x68] sm:$0xff]
        %v387 = vld [vmem:[%s338 + $0x70] sm:$0xff]
        %v388 = vld [vmem:[%s338 + $0x78] sm:$0xff]
        %v389 = vunpack.c.l.bf16 %v357
        %v390 = vunpack.c.l.bf16 %v358
        %v391 = vunpack.c.l.bf16 %v359
        %v392 = vunpack.c.l.bf16 %v360
        %v393 = vunpack.c.l.bf16 %v361
        %v394 = vunpack.c.l.bf16 %v362
        %v395 = vunpack.c.l.bf16 %v363
        %v396 = vunpack.c.l.bf16 %v364
        %v397 = vunpack.c.l.bf16 %v365
        %v398 = vunpack.c.l.bf16 %v366
        %v399 = vunpack.c.l.bf16 %v367
        %v400 = vunpack.c.l.bf16 %v368
        %v401 = vunpack.c.l.bf16 %v369
        %v402 = vunpack.c.l.bf16 %v370
        %v403 = vunpack.c.l.bf16 %v371
        %v404 = vunpack.c.l.bf16 %v372
        %406 = vset.pattern.permute.xlu0 0
        %407 = vperm.xlu0 %406, %v373
        %v408 = vpop.permute.xlu0 %407
        %411 = vset.pattern.permute.xlu0 0
        %412 = vperm.xlu0 %411, %v374
        %v413 = vpop.permute.xlu0 %412
        %416 = vset.pattern.permute.xlu0 0
        %417 = vperm.xlu0 %416, %v375
        %v418 = vpop.permute.xlu0 %417
        %421 = vset.pattern.permute.xlu0 0
        %422 = vperm.xlu0 %421, %v376
        %v423 = vpop.permute.xlu0 %422
        %426 = vset.pattern.permute.xlu0 0
        %427 = vperm.xlu0 %426, %v377
        %v428 = vpop.permute.xlu0 %427
        %431 = vset.pattern.permute.xlu0 0
        %432 = vperm.xlu0 %431, %v378
        %v433 = vpop.permute.xlu0 %432
        %436 = vset.pattern.permute.xlu0 0
        %437 = vperm.xlu0 %436, %v379
        %v438 = vpop.permute.xlu0 %437
        %441 = vset.pattern.permute.xlu0 0
        %442 = vperm.xlu0 %441, %v380
        %v443 = vpop.permute.xlu0 %442
        %446 = vset.pattern.permute.xlu0 0
        %447 = vperm.xlu0 %446, %v381
        %v448 = vpop.permute.xlu0 %447
        %451 = vset.pattern.permute.xlu0 0
        %452 = vperm.xlu0 %451, %v382
        %v453 = vpop.permute.xlu0 %452
        %456 = vset.pattern.permute.xlu0 0
        %457 = vperm.xlu0 %456, %v383
        %v458 = vpop.permute.xlu0 %457
        %461 = vset.pattern.permute.xlu0 0
        %462 = vperm.xlu0 %461, %v384
        %v463 = vpop.permute.xlu0 %462
        %466 = vset.pattern.permute.xlu0 0
        %467 = vperm.xlu0 %466, %v385
        %v468 = vpop.permute.xlu0 %467
        %471 = vset.pattern.permute.xlu0 0
        %472 = vperm.xlu0 %471, %v386
        %v473 = vpop.permute.xlu0 %472
        %476 = vset.pattern.permute.xlu0 0
        %477 = vperm.xlu0 %476, %v387
        %v478 = vpop.permute.xlu0 %477
        %481 = vset.pattern.permute.xlu0 0
        %482 = vperm.xlu0 %481, %v388
        %v483 = vpop.permute.xlu0 %482
        %v485 = vmul.f32 %v389, %v408
        %v486 = vmul.f32 %v390, %v413
        %v487 = vmul.f32 %v391, %v418
        %v488 = vmul.f32 %v392, %v423
        %v489 = vmul.f32 %v393, %v428
        %v490 = vmul.f32 %v394, %v433
        %v491 = vmul.f32 %v395, %v438
        %v492 = vmul.f32 %v396, %v443
        %v493 = vmul.f32 %v397, %v448
        %v494 = vmul.f32 %v398, %v453
        %v495 = vmul.f32 %v399, %v458
        %v496 = vmul.f32 %v400, %v463
        %v497 = vmul.f32 %v401, %v468
        %v498 = vmul.f32 %v402, %v473
        %v499 = vmul.f32 %v403, %v478
        %v500 = vmul.f32 %v404, %v483
        %v501 = vpack.c.bf16 %v486, %v485
        %v502 = vpack.c.bf16 %v488, %v487
        %v503 = vpack.c.bf16 %v490, %v489
        %v504 = vpack.c.bf16 %v492, %v491
        %v505 = vpack.c.bf16 %v494, %v493
        %v506 = vpack.c.bf16 %v496, %v495
        %v507 = vpack.c.bf16 %v498, %v497
        %v508 = vpack.c.bf16 %v500, %v499
        %v509 = vld [vmem:[#allocation2] sm:$0xff]
        %v510 = vld [vmem:[#allocation2 + $0x8] sm:$0xff]
        %v511 = vld [vmem:[#allocation2 + $0x10] sm:$0xff]
        %v512 = vld [vmem:[#allocation2 + $0x18] sm:$0xff]
        %v513 = vld [vmem:[#allocation2 + $0x20] sm:$0xff]
        %v514 = vld [vmem:[#allocation2 + $0x28] sm:$0xff]
        %v515 = vld [vmem:[#allocation2 + $0x30] sm:$0xff]
        %v516 = vld [vmem:[#allocation2 + $0x38] sm:$0xff]
        %v517 = vld [vmem:[%s322] sm:$0xf]
        %v518 = vld [vmem:[%s322 + $0x4] sm:$0xf]
        %v519 = vld [vmem:[%s322 + $0x8] sm:$0xf]
        %v520 = vld [vmem:[%s322 + $0xc] sm:$0xf]
        %v521 = vld [vmem:[%s322 + $0x10] sm:$0xf]
        %v522 = vld [vmem:[%s322 + $0x14] sm:$0xf]
        %v523 = vld [vmem:[%s322 + $0x18] sm:$0xf]
        %v524 = vld [vmem:[%s322 + $0x1c] sm:$0xf]
        %v533 = vunpack.c.l.b16 %v517
        %v534 = vunpack.c.l.b16 %v518
        %v535 = vunpack.c.l.b16 %v519
        %v536 = vunpack.c.l.b16 %v520
        %v537 = vunpack.c.l.b16 %v521
        %v538 = vunpack.c.l.b16 %v522
        %v539 = vunpack.c.l.b16 %v523
        %v540 = vunpack.c.l.b16 %v524
        %v541 = vpack.c.b16 %v534, %v533
        %v542 = vpack.c.b16 %v536, %v535
        %v543 = vpack.c.b16 %v538, %v537
        %v544 = vpack.c.b16 %v540, %v539
        %549 = vmatprep.subr.bf16.mxu0 0
        %550 = vmatpush1.bf16.msra.mxu0 %v508
        %551 = vmatprep.subr.bf16.mxu0 0
        %552 = vmatpush1.bf16.msra.mxu0 %v507
        %553 = vmatprep.subr.bf16.mxu0 0
        %554 = vmatpush1.bf16.msra.mxu0 %v506
        %555 = vmatprep.subr.bf16.mxu0 0
        %556 = vmatpush1.bf16.msra.mxu0 %v505
        %557 = vmatprep.subr.bf16.mxu0 0
        %558 = vmatpush1.bf16.msra.mxu0 %v504
        %559 = vmatprep.subr.bf16.mxu0 0
        %560 = vmatpush1.bf16.msra.mxu0 %v503
        %561 = vmatprep.subr.bf16.mxu0 0
        %562 = vmatpush1.bf16.msra.mxu0 %v502
        %563 = vmatprep.subr.bf16.mxu0 0
        %564 = vmatpush1.bf16.msra.mxu0 %v501
        %565 = vmatprep.subr.bf16.mxu0 0
        %566 = vmatpush2.bf16.msra.mxu0 0
        %567 = vmatprep.subr.bf16.mxu0 0
        %568 = vmatpush2.bf16.msra.mxu0 0
        %569 = vmatprep.subr.bf16.mxu0 0
        %570 = vmatpush2.bf16.msra.mxu0 0
        %571 = vmatprep.subr.bf16.mxu0 0
        %572 = vmatpush2.bf16.msra.mxu0 0
        %573 = vmatprep.subr.bf16.mxu0 0
        %574 = vmatpush2.bf16.msra.mxu0 0
        %575 = vmatprep.subr.bf16.mxu0 0
        %576 = vmatpush2.bf16.msra.mxu0 0
        %577 = vmatprep.subr.bf16.mxu0 0
        %578 = vmatpush2.bf16.msra.mxu0 0
        %579 = vmatprep.subr.bf16.mxu0 0
        %580 = vmatpush2.bf16.msra.mxu0 0
        %581 = vmatprep.mubr.bf16.mxu0 0
        %582 = vmatmul.mubr.bf16.gmra.mxu0 %v541
        %v583 = vpop.f32.mrf.mxu0
        %v584 = vadd.f32 0.0, %v583
        %v585 = vpop.f32.mrf.mxu0
        %v586 = vpop.f32.mrf.mxu0
        %v587 = vadd.f32 0.0, %v586
        %v588 = vpop.f32.mrf.mxu0
        %589 = vmatprep.mubr.bf16.mxu0 0
        %590 = vmatmul.mubr.bf16.gmra.mxu0 %v542
        %v591 = vpop.f32.mrf.mxu0
        %v592 = vadd.f32 0.0, %v591
        %v593 = vpop.f32.mrf.mxu0
        %v594 = vpop.f32.mrf.mxu0
        %v595 = vadd.f32 0.0, %v594
        %v596 = vpop.f32.mrf.mxu0
        %597 = vmatprep.mubr.bf16.mxu0 0
        %598 = vmatmul.mubr.bf16.gmra.mxu0 %v543
        %v599 = vpop.f32.mrf.mxu0
        %v600 = vadd.f32 0.0, %v599
        %v601 = vpop.f32.mrf.mxu0
        %v602 = vpop.f32.mrf.mxu0
        %v603 = vadd.f32 0.0, %v602
        %v604 = vpop.f32.mrf.mxu0
        %605 = vmatprep.mubr.bf16.mxu0 0
        %606 = vmatmul.mubr.bf16.gmra.mxu0 %v544
        %v607 = vpop.f32.mrf.mxu0
        %v608 = vadd.f32 0.0, %v607
        %v609 = vpop.f32.mrf.mxu0
        %v610 = vpop.f32.mrf.mxu0
        %v611 = vadd.f32 0.0, %v610
        %v612 = vpop.f32.mrf.mxu0
        %613 = vdwg.mxu0
        %v614 = vadd.f32 %v509, %v584
        %v615 = vadd.f32 %v510, %v587
        %v616 = vadd.f32 %v511, %v592
        %v617 = vadd.f32 %v512, %v595
        %v618 = vadd.f32 %v513, %v600
        %v619 = vadd.f32 %v514, %v603
        %v620 = vadd.f32 %v515, %v608
        %v621 = vadd.f32 %v516, %v611
        %622 = vst [vmem:[#allocation2] sm:$0xff] %v614
        %623 = vst [vmem:[#allocation2 + $0x8] sm:$0xff] %v615
        %624 = vst [vmem:[#allocation2 + $0x10] sm:$0xff] %v616
        %625 = vst [vmem:[#allocation2 + $0x18] sm:$0xff] %v617
        %626 = vst [vmem:[#allocation2 + $0x20] sm:$0xff] %v618
        %627 = vst [vmem:[#allocation2 + $0x28] sm:$0xff] %v619
        %628 = vst [vmem:[#allocation2 + $0x30] sm:$0xff] %v620
        %629 = vst [vmem:[#allocation2 + $0x38] sm:$0xff] %v621
        // Predicated region
        $region45: #{tpu_custom_call.1} parent=39 // pred_check
          %p630 = pneg %p345
        $region46: #{tpu_custom_call.1} parent=39 // pred_check_branch
          %632 = sbr.rel (%p630) target = $region48
        $region47: #{tpu_custom_call.1} parent=39 // pred_region
          %v633 = vld [vmem:[#allocation2] sm:$0xff]
          %v634 = vld [vmem:[#allocation2 + $0x8] sm:$0xff]
          %v635 = vld [vmem:[#allocation2 + $0x10] sm:$0xff]
          %v636 = vld [vmem:[#allocation2 + $0x18] sm:$0xff]
          %v637 = vld [vmem:[#allocation2 + $0x20] sm:$0xff]
          %v638 = vld [vmem:[#allocation2 + $0x28] sm:$0xff]
          %v639 = vld [vmem:[#allocation2 + $0x30] sm:$0xff]
          %v640 = vld [vmem:[#allocation2 + $0x38] sm:$0xff]
          %v641 = vld [vmem:[%s342] sm:$0x1]
          %v643 = vlaneseq
          %v644 = vshrl.u32 %v643, 7
          %v645 = vsub.s32 0, %v644
          %v646 = vrot.slane %v641, %v645
          %v648 = vmul.f32 %v633, %v646
          %v649 = vmul.f32 %v634, %v646
          %v650 = vmul.f32 %v635, %v646
          %v651 = vmul.f32 %v636, %v646
          %v652 = vmul.f32 %v637, %v646
          %v653 = vmul.f32 %v638, %v646
          %v654 = vmul.f32 %v639, %v646
          %v655 = vmul.f32 %v640, %v646
          %v656 = vld [vmem:[%s4] sm:$0x1]
          %v658 = vlaneseq
          %v659 = vshrl.u32 %v658, 7
          %v660 = vsub.s32 0, %v659
          %v661 = vrot.slane %v656, %v660
          %v663 = vadd.f32 %v648, %v661
          %v664 = vadd.f32 %v649, %v661
          %v665 = vadd.f32 %v650, %v661
          %v666 = vadd.f32 %v651, %v661
          %v667 = vadd.f32 %v652, %v661
          %v668 = vadd.f32 %v653, %v661
          %v669 = vadd.f32 %v654, %v661
          %v670 = vadd.f32 %v655, %v661
          %vm671 = vcmp.ge.f32.partialorder %v663, 0.0
          %vm672 = vcmp.ge.f32.partialorder %v664, 0.0
          %vm673 = vcmp.ge.f32.partialorder %v665, 0.0
          %vm674 = vcmp.ge.f32.partialorder %v666, 0.0
          %vm675 = vcmp.ge.f32.partialorder %v667, 0.0
          %vm676 = vcmp.ge.f32.partialorder %v668, 0.0
          %vm677 = vcmp.ge.f32.partialorder %v669, 0.0
          %vm678 = vcmp.ge.f32.partialorder %v670, 0.0
          %v679 = vmul.f32 %v663, 0.2
          %v680 = vmul.f32 %v664, 0.2
          %v681 = vmul.f32 %v665, 0.2
          %v682 = vmul.f32 %v666, 0.2
          %v683 = vmul.f32 %v667, 0.2
          %v684 = vmul.f32 %v668, 0.2
          %v685 = vmul.f32 %v669, 0.2
          %v686 = vmul.f32 %v670, 0.2
          %v687 = vsel %vm671, %v663, %v679
          %v688 = vsel %vm672, %v664, %v680
          %v689 = vsel %vm673, %v665, %v681
          %v690 = vsel %vm674, %v666, %v682
          %v691 = vsel %vm675, %v667, %v683
          %v692 = vsel %vm676, %v668, %v684
          %v693 = vsel %vm677, %v669, %v685
          %v694 = vsel %vm678, %v670, %v686
          %v695 = vmul.f32 %v687, 1.4142135
          %v696 = vmul.f32 %v688, 1.4142135
          %v697 = vmul.f32 %v689, 1.4142135
          %v698 = vmul.f32 %v690, 1.4142135
          %v699 = vmul.f32 %v691, 1.4142135
          %v700 = vmul.f32 %v692, 1.4142135
          %v701 = vmul.f32 %v693, 1.4142135
          %v702 = vmul.f32 %v694, 1.4142135
          %703 = vst [vmem:[%s310] sm:$0xff] %v695
          %704 = vst [vmem:[%s310 + $0x8] sm:$0xff] %v696
          %705 = vst [vmem:[%s310 + $0x10] sm:$0xff] %v697
          %706 = vst [vmem:[%s310 + $0x18] sm:$0xff] %v698
          %707 = vst [vmem:[%s310 + $0x20] sm:$0xff] %v699
          %708 = vst [vmem:[%s310 + $0x28] sm:$0xff] %v700
          %709 = vst [vmem:[%s310 + $0x30] sm:$0xff] %v701
          %710 = vst [vmem:[%s310 + $0x38] sm:$0xff] %v702
        $region48: #{tpu_custom_call.1} parent=39 // pred_fallthru
          _
        %s711 = sand.u32 %s179, 1
        %s712 = scalar_lea.sflag [#allocation4], %s711
        %s713 = sand.u32 %s179, 1
        %s714 = smul.addr %s713, 64
        %s715 = scalar_lea.vmem [#allocation3], %s714
        // Predicated region
        $region49: #{tpu_custom_call.1} parent=39 // pred_check
          %p716 = pneg %p189
        $region50: #{tpu_custom_call.1} parent=39 // pred_check_branch
          %718 = sbr.rel (%p716) target = $region52
        $region51: #{tpu_custom_call.1} parent=39 // pred_region
          %s719 = smul.u32 8, %s25
          %s721 = ssub.s32 1024, 1024
          %722 = vsyncadd %s712, %s721
          %s723 = smul.addr %s24, 8
          %s724 = sadd.s32 %s719, %s723
          %s725 = smul.addr %s724, 128
          %s726 = scalar_lea.hbm %s5, %s725
          %s727 = sshll.u32 %s715, 4
          %s728 = int_to_ptr.vmem [resolvable:$true] %s727
          %733 = dma.vmem_to_hbm [thread:$0]  %s728, 1024, %s726, %s712, 128, 128, 8
        $region52: #{tpu_custom_call.1} parent=39 // pred_fallthru
          _
      $region40: #{tpu_custom_call.1} parent=5 // pred_fallthru
        _
      %p734 = scmp.le.s32.totalorder 2, %s14
      // Predicated region
      $region53: #{tpu_custom_call.1} parent=5 // pred_check
        %p735 = pneg %p734
      $region54: #{tpu_custom_call.1} parent=5 // pred_check_branch
        %737 = sbr.rel (%p735) target = $region56
      $region55: #{tpu_custom_call.1} parent=5 // pred_region
        %s738 = ssub.s32 %s14, 2
        // Predicated region
        $region57: #{tpu_custom_call.1} parent=55 // pred_check
          %p739 = pneg %p195
        $region58: #{tpu_custom_call.1} parent=55 // pred_check_branch
          %741 = sbr.rel (%p739) target = $region60
        $region59: #{tpu_custom_call.1} parent=55 // pred_region
          %s742 = sand.u32 %s180, 1
          %s743 = scalar_lea.sflag [#allocation4], %s742
          %s744 = sand.u32 %s180, 1
          %s745 = smul.addr %s744, 64
          %s746 = scalar_lea.vmem [#allocation3], %s745
          %747 = dma.done %s743, 1024
        $region60: #{tpu_custom_call.1} parent=55 // pred_fallthru
          _
      $region56: #{tpu_custom_call.1} parent=5 // pred_fallthru
        _
    $region6: #{tpu_custom_call.1} parent=1 // loop_footer
      %s18 = sadd.s32 1, %s14
    $region7: #{tpu_custom_call.1} parent=1 // loop_footer_branch
      %13 = sbr.rel target = $region3
    $region8: #{tpu_custom_call.1} parent=1 // loop_exit
      _
    %748 = vsyncpa [#allocation4], 1
    %s749 = scalar_lea.sflag [#allocation4], 1
    %750 = vsyncpa %s749, 1

</llo_original>
